<compile_context>
chip_gen: v6e
topology: v6e:2x2x1
jax: 0.10.0
libtpu: 0.0.40
codegen_flags: <defaults>
</compile_context>

<pallas_src>
import functools

import jax
import jax.numpy as jnp
from jax.experimental import pallas as pl
from jax.experimental.pallas import tpu as pltpu


def _round_up(x, m):
    return (x + m - 1) // m * m


# ---------------------------------------------------------------------------
# Stage 1: attention pooling over the sequence -> cat = [output_e, last_memory]
# ---------------------------------------------------------------------------
def pool_kernel(all_mem_ref, last_mem_ref, mask_ref,
                ue_w_ref, ue_b_ref, we_w_ref, we_b_ref,
                ve_w_ref, ve_b_ref, cat_ref):
    all_mem = all_mem_ref[...]            # [B, S, H] f32
    last_mem = last_mem_ref[...]          # [B, H]    f32
    seq_mask = mask_ref[...]              # [B, S]    i32 (1 -> masked position)
    B, S, H = all_mem.shape

    # Ue(all_memory): S padded to x8 / H padded to x128 -> reshape is a layout
    # no-op, single lane-dense MXU matmul.
    am2 = all_mem.reshape(B * S, H)
    all_p = jnp.dot(am2, ue_w_ref[...],
                    preferred_element_type=jnp.float32) + ue_b_ref[...]
    all_p = all_p.reshape(B, S, H)

    # We(last_memory)
    last_p = jnp.dot(last_mem, we_w_ref[...],
                     preferred_element_type=jnp.float32) + we_b_ref[...]

    ee = jnp.tanh(all_p + last_p[:, None, :])                          # [B, S, H]

    # Ve(.) squeezed -> weighted lane reduction; ve_b is a scalar in SMEM.
    logits = jnp.sum(ee * ve_w_ref[...][None, :, :], axis=-1) + ve_b_ref[0, 0]
    logits = jnp.where(seq_mask > 0, jnp.float32(-1e9), logits)        # [B, S]

    # softmax over the (tiny) sequence dim
    m = jnp.max(logits, axis=1, keepdims=True)
    e = jnp.exp(logits - m)
    alpha = e / jnp.sum(e, axis=1, keepdims=True)                      # [B, S]

    output_e = jnp.sum(alpha[:, :, None] * all_mem, axis=1)            # [B, H]
    cat = jnp.concatenate([output_e, last_mem], axis=1)                # [B, 2H]
    cat_ref[...] = cat.astype(cat_ref.dtype)                           # bf16 out


# ---------------------------------------------------------------------------
# Stage 2 (fused): tiled scoring matmul + explore mask + online softmax.
# Output block is VMEM-resident across the whole grid; normalized in place on
# the final tile.
# ---------------------------------------------------------------------------
def score_softmax_kernel(cat_ref, item_seq_ref, w_ref, out_ref, m_sc, l_sc,
                         *, n_valid, tile_n):
    j = pl.program_id(0)
    nt = pl.num_programs(0)
    col0 = pl.multiple_of(j * tile_n, 128)

    cat = cat_ref[...]                                   # [B, 2H_pad] bf16 (resident)
    w = w_ref[...]                                       # [2H_pad, tile_n] bf16 (streamed)
    s = jnp.dot(cat, w, preferred_element_type=jnp.float32)   # [B, tile_n] f32
    B = s.shape[0]

    col = col0 + jax.lax.broadcasted_iota(jnp.int32, (B, tile_n), 1)

    # Explore mask: column n masked iff some sanitized item_seq[b, si] == n.
    # (Wrapper maps items <= 0 and padding to -1, so a single compare per
    # position suffices.)  Padded item columns folded into the same mask.
    item_seq = item_seq_ref[...]                         # [B, S_pad] i32
    s_len = item_seq.shape[1]
    emask = col >= n_valid
    for si in range(s_len):
        emask = jnp.logical_or(emask, item_seq[:, si:si + 1] == col)

    neg = jnp.float32(-1e30)                             # large finite: no inf-inf NaN
    s = jnp.where(emask, neg, s)

    # Per-tile softmax stats + online combine (resident scratch).
    tmax = jnp.max(s, axis=1, keepdims=True)                    # [B, 1]
    tsum = jnp.sum(jnp.exp(s - tmax), axis=1, keepdims=True)    # [B, 1]

    @pl.when(j == 0)
    def _():
        m_sc[...] = jnp.broadcast_to(tmax, m_sc.shape)
        l_sc[...] = jnp.broadcast_to(tsum, l_sc.shape)

    @pl.when(j > 0)
    def _():
        m_old = m_sc[:, 0:1]
        l_old = l_sc[:, 0:1]
        m_new = jnp.maximum(m_old, tmax)
        l_new = l_old * jnp.exp(m_old - m_new) + tsum * jnp.exp(tmax - m_new)
        m_sc[...] = jnp.broadcast_to(m_new, m_sc.shape)
        l_sc[...] = jnp.broadcast_to(l_new, l_sc.shape)

    # Stash the raw (masked) score tile in the VMEM-resident output block.
    out_ref[:, pl.ds(col0, tile_n)] = s

    # Final tile: normalize the whole resident block in place (one VMEM pass).
    @pl.when(j == nt - 1)
    def _():
        m = m_sc[:, 0:1]
        inv_l = pl.reciprocal(l_sc[:, 0:1], approx=True)
        out_ref[...] = jnp.exp(out_ref[...] - m) * inv_l


# ---------------------------------------------------------------------------
# One-time parameter preparation (pad / transpose / cast; tile-major explore W)
# ---------------------------------------------------------------------------
def prepare_explore_decoder_params(params, *, hidden_size, num_item, tile_n=None):
    f32 = jnp.float32
    bf16 = jnp.bfloat16
    H, N = hidden_size, num_item
    H_pad = _round_up(H, 128)
    if tile_n is None:
        # bf16 weight -> larger contiguous tiles; keep vreg live-set comfortable.
        tile_n = min(2048, _round_up(N, 128))
    tile_n = _round_up(tile_n, 128)
    N_pad = _round_up(N, tile_n)
    nt = N_pad // tile_n

    ue_w = jnp.zeros((H_pad, H_pad), f32).at[:H, :H].set(params["ue_wT"].astype(f32))
    ue_b = jnp.zeros((1, H_pad), f32).at[:, :H].set(params["ue_b"].astype(f32))
    we_w = jnp.zeros((H_pad, H_pad), f32).at[:H, :H].set(params["we_wT"].astype(f32))
    we_b = jnp.zeros((1, H_pad), f32).at[:, :H].set(params["we_b"].astype(f32))
    ve_w = jnp.zeros((1, H_pad), f32).at[:, :H].set(params["ve_w"].astype(f32))
    ve_b = params["ve_b"].astype(f32).reshape(1, 1)

    # Explore matrix: pad, split the two H-blocks to their padded row ranges,
    # cast to bf16, reshape to tile-major so each tile is one contiguous slab.
    mex = jnp.zeros((2 * H_pad, N_pad), f32)
    mex = mex.at[:H, :N].set(params["mex_wT"][:H].astype(f32))
    mex = mex.at[H_pad:H_pad + H, :N].set(params["mex_wT"][H:].astype(f32))
    mex_tiles = (mex.astype(bf16)
                 .reshape(2 * H_pad, nt, tile_n)
                 .transpose(1, 0, 2))                     # [nt, 2H_pad, tile_n]

    return {
        "ue_w": ue_w, "ue_b": ue_b, "we_w": we_w, "we_b": we_b,
        "ve_w": ve_w, "ve_b": ve_b, "mex_w_tiles": mex_tiles,
        "H": H, "H_pad": H_pad, "N": N, "N_pad": N_pad,
        "tile_n": tile_n, "nt": nt,
    }


# ---------------------------------------------------------------------------
# Per-call wrapper
# ---------------------------------------------------------------------------
def explore_recommendation_decoder(all_memory, last_memory, item_seq, mask, prep):
    f32 = jnp.float32
    B, S, H = all_memory.shape
    H_pad, N, N_pad = prep["H_pad"], prep["N"], prep["N_pad"]
    tile_n, nt = prep["tile_n"], prep["nt"]
    B_pad = _round_up(B, 8)
    S_pad = _round_up(S, 8)

    # ---- pad activations; sanitize item_seq so items <= 0 / padding -> -1 ---
    am = jnp.zeros((B_pad, S_pad, H_pad), f32).at[:B, :S, :H].set(all_memory.astype(f32))
    lm = jnp.zeros((B_pad, H_pad), f32).at[:B, :H].set(last_memory.astype(f32))
    iseq = jnp.full((B_pad, S_pad), -1, jnp.int32).at[:B, :S].set(
        jnp.where(item_seq > 0, item_seq, -1).astype(jnp.int32))
    msk = jnp.ones((B_pad, S_pad), jnp.int32).at[:B, :S].set(mask.astype(jnp.int32))

    vmem = pl.BlockSpec(memory_space=pltpu.MemorySpace.VMEM)
    smem = pl.BlockSpec(memory_space=pltpu.MemorySpace.SMEM)

    # ---- stage 1: attention pooling -> cat (bf16) ---------------------------
    cat = pl.pallas_call(
        pool_kernel,
        out_shape=jax.ShapeDtypeStruct((B_pad, 2 * H_pad), jnp.bfloat16),
        in_specs=[vmem, vmem, vmem, vmem, vmem, vmem, vmem, vmem, smem],
        out_specs=vmem,
    )(am, lm, msk, prep["ue_w"], prep["ue_b"], prep["we_w"], prep["we_b"],
      prep["ve_w"], prep["ve_b"])

    # ---- stage 2 (fused): scoring + explore mask + online softmax ----------
    vmem_bytes = (2 * (2 * H_pad) * tile_n * 2      # double-buffered bf16 weight tile
                  + B_pad * N_pad * 4               # resident scores/probs block
                  + 2 * B_pad * (2 * H_pad) * 2     # cat
                  + 2 * B_pad * S_pad * 4           # item_seq
                  + 2 * B_pad * 128 * 4)            # m/l scratch
    cost = pl.CostEstimate(
        flops=2 * B_pad * (2 * H_pad) * N_pad,
        transcendentals=2 * B_pad * N_pad,
        bytes_accessed=(2 * H_pad) * N_pad * 2 + B_pad * N_pad * 4,
    )
    probs = pl.pallas_call(
        functools.partial(score_softmax_kernel, n_valid=N, tile_n=tile_n),
        grid=(nt,),
        out_shape=jax.ShapeDtypeStruct((B_pad, N_pad), f32),
        in_specs=[
            pl.BlockSpec((B_pad, 2 * H_pad), lambda j: (0, 0)),        # cat (resident)
            pl.BlockSpec((B_pad, S_pad), lambda j: (0, 0)),            # item_seq (resident)
            pl.BlockSpec((None, 2 * H_pad, tile_n), lambda j: (j, 0, 0)),  # weight tile (streamed)
        ],
        out_specs=pl.BlockSpec((B_pad, N_pad), lambda j: (0, 0)),      # resident accumulator
        scratch_shapes=[pltpu.VMEM((B_pad, 128), f32),                 # running max
                        pltpu.VMEM((B_pad, 128), f32)],                # running sum-exp
        compiler_params=pltpu.CompilerParams(
            dimension_semantics=("arbitrary",),
            vmem_limit_bytes=int(min(64 << 20, max(32 << 20, 2 * vmem_bytes)))),
        cost_estimate=cost,
    )(cat, iseq, prep["mex_w_tiles"])

    return probs[:B, :N]


# ---------------------------------------------------------------------------
# Pure-JAX reference mirroring the PyTorch forward (dropout = identity)
# ---------------------------------------------------------------------------
def reference(all_memory, last_memory, item_seq, mask, p):
    all_p = jnp.einsum('bsh,hk->bsk', all_memory, p["ue_wT"]) + p["ue_b"]
    last_p = last_memory @ p["we_wT"] + p["we_b"]
    ee = jnp.tanh(all_p + last_p[:, None, :])
    logits = jnp.einsum('bsh,h->bs', ee, p["ve_w"][0]) + p["ve_b"][0, 0]
    logits = jnp.where(mask, -1e9, logits)
    alpha = jax.nn.softmax(logits, axis=1)
    output_e = jnp.sum(alpha[:, :, None] * all_memory, axis=1)
    cat = jnp.concatenate([output_e, last_memory], axis=1)
    scores = cat @ p["mex_wT"]
    onehot = jax.nn.one_hot(item_seq, scores.shape[-1], dtype=jnp.float32)
    emask = jnp.einsum('bs,bsn->bn',
                       (item_seq > 0).astype(jnp.float32), onehot) > 0
    scores = jnp.where(emask, -jnp.inf, scores)
    return jax.nn.softmax(scores, axis=1)


if __name__ == "__main__":
    # batch, seq_len, hidden_size, num_item (N chosen so the item grid has 3 tiles)
    B, S, H, N = 2, 8, 32, 300
    key = jax.random.PRNGKey(0)
    ks = jax.random.split(key, 11)

    all_memory = jax.random.normal(ks[0], (B, S, H), jnp.float32)
    last_memory = jax.random.normal(ks[1], (B, H), jnp.float32)
    item_seq = jax.random.randint(ks[2], (B, S), 0, N, jnp.int32)
    mask = jax.random.uniform(ks[3], (B, S)) < 0.2          # True = masked position

    params = {
        "ue_wT":  jax.random.normal(ks[4], (H, H), jnp.float32) * 0.1,
        "ue_b":   jax.random.normal(ks[5], (1, H), jnp.float32) * 0.01,
        "we_wT":  jax.random.normal(ks[6], (H, H), jnp.float32) * 0.1,
        "we_b":   jax.random.normal(ks[7], (1, H), jnp.float32) * 0.01,
        "ve_w":   jax.random.normal(ks[8], (1, H), jnp.float32) * 0.1,
        "ve_b":   jax.random.normal(ks[9], (1, 1), jnp.float32) * 0.01,
        "mex_wT": jax.random.normal(ks[10], (2 * H, N), jnp.float32) * 0.1,
    }

    # One-time weight prep (padded / tile-major / bf16) -- outside the hot path.
    prep = prepare_explore_decoder_params(params, hidden_size=H, num_item=N,
                                          tile_n=128)

    out = explore_recommendation_decoder(all_memory, last_memory, item_seq, mask,
                                         prep)
    out = jax.block_until_ready(out)

    ref = reference(all_memory, last_memory, item_seq, mask, params)
    assert out.shape == ref.shape
    assert bool(jnp.all(jnp.isfinite(out))), "kernel produced non-finite values"
    assert jnp.allclose(out, ref, atol=2e-3, rtol=2e-3), "kernel != reference"
    print("KERNEL_OK")
</pallas_src>

<mosaic_0001>
module attributes {stable_mosaic.version = 11 : i64} {
  func.func @pool_kernel(%arg0: memref<8x8x128xf32, #tpu.memory_space<vmem>>, %arg1: memref<8x128xf32, #tpu.memory_space<vmem>>, %arg2: memref<8x8xi32, #tpu.memory_space<vmem>>, %arg3: memref<128x128xf32, #tpu.memory_space<vmem>>, %arg4: memref<1x128xf32, #tpu.memory_space<vmem>>, %arg5: memref<128x128xf32, #tpu.memory_space<vmem>>, %arg6: memref<1x128xf32, #tpu.memory_space<vmem>>, %arg7: memref<1x128xf32, #tpu.memory_space<vmem>>, %arg8: memref<1x1xf32, #tpu.memory_space<smem>>, %arg9: memref<8x256xbf16, #tpu.memory_space<vmem>>) attributes {dimension_semantics = [], scalar_prefetch = 0 : i64, scratch_operands = 0 : i64, tpu.core_type = #tpu.core_type<tc>} {
    %c0 = arith.constant 0 : index
    %c0_0 = arith.constant 0 : index
    %c0_1 = arith.constant 0 : index
    %0 = vector.load %arg0[%c0, %c0_0, %c0_1] : memref<8x8x128xf32, #tpu.memory_space<vmem>>, vector<8x8x128xf32>
    %c0_2 = arith.constant 0 : index
    %c0_3 = arith.constant 0 : index
    %1 = vector.load %arg1[%c0_2, %c0_3] : memref<8x128xf32, #tpu.memory_space<vmem>>, vector<8x128xf32>
    %c0_4 = arith.constant 0 : index
    %c0_5 = arith.constant 0 : index
    %2 = vector.load %arg2[%c0_4, %c0_5] : memref<8x8xi32, #tpu.memory_space<vmem>>, vector<8x8xi32>
    %3 = vector.shape_cast %0 : vector<8x8x128xf32> to vector<64x128xf32>
    %c0_6 = arith.constant 0 : index
    %c0_7 = arith.constant 0 : index
    %4 = vector.load %arg3[%c0_6, %c0_7] : memref<128x128xf32, #tpu.memory_space<vmem>>, vector<128x128xf32>
    %cst = arith.constant dense<0.000000e+00> : vector<64x128xf32>
    %5 = tpu.matmul %3, %4, %cst {dimension_numbers = #tpu.dot_dimension_numbers<[1], [0], [0], [1], [0, 0, 1, 1], [], []>} : vector<64x128xf32>, vector<128x128xf32>, vector<64x128xf32> -> vector<64x128xf32>
    %c0_8 = arith.constant 0 : index
    %c0_9 = arith.constant 0 : index
    %6 = vector.load %arg4[%c0_8, %c0_9] : memref<1x128xf32, #tpu.memory_space<vmem>>, vector<1x128xf32>
    %7 = vector.broadcast %6 : vector<1x128xf32> to vector<64x128xf32>
    %8 = arith.addf %5, %7 : vector<64x128xf32>
    %9 = vector.shape_cast %8 : vector<64x128xf32> to vector<8x8x128xf32>
    %c0_10 = arith.constant 0 : index
    %c0_11 = arith.constant 0 : index
    %10 = vector.load %arg5[%c0_10, %c0_11] : memref<128x128xf32, #tpu.memory_space<vmem>>, vector<128x128xf32>
    %cst_12 = arith.constant dense<0.000000e+00> : vector<8x128xf32>
    %11 = tpu.matmul %1, %10, %cst_12 {dimension_numbers = #tpu.dot_dimension_numbers<[1], [0], [0], [1], [0, 0, 1, 1], [], []>} : vector<8x128xf32>, vector<128x128xf32>, vector<8x128xf32> -> vector<8x128xf32>
    %c0_13 = arith.constant 0 : index
    %c0_14 = arith.constant 0 : index
    %12 = vector.load %arg6[%c0_13, %c0_14] : memref<1x128xf32, #tpu.memory_space<vmem>>, vector<1x128xf32>
    %13 = vector.broadcast %12 : vector<1x128xf32> to vector<8x128xf32>
    %14 = arith.addf %11, %13 : vector<8x128xf32>
    %15 = vector.shape_cast %14 : vector<8x128xf32> to vector<8x1x128xf32>
    %16 = vector.broadcast %15 : vector<8x1x128xf32> to vector<8x8x128xf32>
    %17 = arith.addf %9, %16 : vector<8x8x128xf32>
    %18 = math.tanh %17 : vector<8x8x128xf32>
    %c0_15 = arith.constant 0 : index
    %c0_16 = arith.constant 0 : index
    %19 = vector.load %arg7[%c0_15, %c0_16] : memref<1x128xf32, #tpu.memory_space<vmem>>, vector<1x128xf32>
    %20 = vector.shape_cast %19 : vector<1x128xf32> to vector<1x1x128xf32>
    %21 = vector.broadcast %20 : vector<1x1x128xf32> to vector<8x8x128xf32>
    %22 = arith.mulf %18, %21 : vector<8x8x128xf32>
    %cst_17 = arith.constant dense<0.000000e+00> : vector<8x8xf32>
    %23 = vector.multi_reduction <add>, %22, %cst_17 [2] : vector<8x8x128xf32> to vector<8x8xf32>
    %c0_18 = arith.constant 0 : index
    %c0_19 = arith.constant 0 : index
    %24 = memref.load %arg8[%c0_18, %c0_19] : memref<1x1xf32, #tpu.memory_space<smem>>
    %25 = vector.broadcast %24 : f32 to vector<8x8xf32>
    %26 = arith.addf %23, %25 : vector<8x8xf32>
    %c0_i32 = arith.constant 0 : i32
    %27 = vector.broadcast %c0_i32 : i32 to vector<8x8xi32>
    %28 = arith.cmpi sgt, %2, %27 : vector<8x8xi32>
    %cst_20 = arith.constant -1.000000e+09 : f32
    %29 = vector.broadcast %cst_20 : f32 to vector<8x8xf32>
    %30 = arith.select %28, %29, %26 : vector<8x8xi1>, vector<8x8xf32>
    %cst_21 = arith.constant dense<0xFF800000> : vector<8xf32>
    %31 = vector.multi_reduction <maximumf>, %30, %cst_21 [1] : vector<8x8xf32> to vector<8xf32>
    %32 = vector.shape_cast %31 : vector<8xf32> to vector<8x1xf32>
    %33 = vector.broadcast %32 : vector<8x1xf32> to vector<8x8xf32>
    %34 = arith.subf %30, %33 : vector<8x8xf32>
    %35 = math.exp %34 : vector<8x8xf32>
    %cst_22 = arith.constant dense<0.000000e+00> : vector<8xf32>
    %36 = vector.multi_reduction <add>, %35, %cst_22 [1] : vector<8x8xf32> to vector<8xf32>
    %37 = vector.shape_cast %36 : vector<8xf32> to vector<8x1xf32>
    %38 = vector.broadcast %37 : vector<8x1xf32> to vector<8x8xf32>
    %39 = arith.divf %35, %38 : vector<8x8xf32>
    %40 = vector.shape_cast %39 : vector<8x8xf32> to vector<8x8x1xf32>
    %41 = vector.broadcast %40 : vector<8x8x1xf32> to vector<8x8x128xf32>
    %42 = arith.mulf %41, %0 : vector<8x8x128xf32>
    %cst_23 = arith.constant dense<0.000000e+00> : vector<8x128xf32>
    %43 = vector.multi_reduction <add>, %42, %cst_23 [1] : vector<8x8x128xf32> to vector<8x128xf32>
    %44 = tpu.concatenate %43, %1 in 1 : vector<8x128xf32>, vector<8x128xf32> -> vector<8x256xf32>
    %45 = arith.truncf %44 : vector<8x256xf32> to vector<8x256xbf16>
    %c0_24 = arith.constant 0 : index
    %c0_25 = arith.constant 0 : index
    %46 = vector.load %arg9[%c0_24, %c0_25] : memref<8x256xbf16, #tpu.memory_space<vmem>>, vector<8x256xbf16>
    tpu.vector_store %arg9[%c0_24, %c0_25], %45 {strides = array<i32>} : memref<8x256xbf16, #tpu.memory_space<vmem>>, vector<8x256xbf16>,
    return
  }
}

</mosaic_0001>

<llo_original>
// kernel: tpu_custom_call.1
$region0: #{tpu_custom_call.1}
  #allocation0 [shape = 'u32[]', space=smem, size = 0x4, offset = 0x4, fixed_abs, tag = 'smem constant byte address 0x4 - core index']
  #allocation1 [shape = 'u32[144,128]{1,0:T(1,128)}', space=vmem, size = 0x12000, scoped, tag = 'internal scratch']
  #allocation2 [shape = 'f32[1,1]{1,0:T(1,128)S(6)}', space=smem, size = 0x200, scoped, tag = 'scoped memory for tpu_custom_call.1']
  %s0 = inlined_call_operand.hbm [shape: f32[8,8,128], index: 0, kind: input, shape index: {}]
  %s1 = inlined_call_operand.hbm [shape: f32[8,128], index: 1, kind: input, shape index: {}]
  %s2 = inlined_call_operand.hbm [shape: s32[8,8], index: 2, kind: input, shape index: {}]
  %s3 = inlined_call_operand.hbm [shape: f32[128,128], index: 3, kind: input, shape index: {}]
  %s4 = inlined_call_operand.vmem [shape: f32[1,128], index: 4, kind: input, shape index: {}]
  %s5 = inlined_call_operand.hbm [shape: f32[128,128], index: 5, kind: input, shape index: {}]
  %s6 = inlined_call_operand.vmem [shape: f32[1,128], index: 6, kind: input, shape index: {}]
  %s7 = inlined_call_operand.vmem [shape: f32[1,128], index: 7, kind: input, shape index: {}]
  %s8 = inlined_call_operand.<no memory space> [shape: f32[1,1], index: 8, kind: input, shape index: {}]
  %s9 = inlined_call_operand.hbm [shape: bf16[8,256], index: 9, kind: output, shape index: {}]
  %s10 = sld [smem:[#allocation0]]
  $region66: #{tpu_custom_call.1} parent=0
    _
  %s12 = ssub.s32 1, %s10
  %s13 = scalar_select 0, %s12, %s10
  %14 = sst [smem:[#allocation2]] %s8
  $region1: #{tpu_custom_call.1} parent=0
    #allocation3 [shape = 'u8[32768]{0}', space=vmem, size = 0x8000, scoped, tag = 'input window, operand 0, single buffered']
    #allocation4 [shape = 's32[1]{0}', space=sflag, size = 0x4, scoped, tag = 'scoped memory for tpu_custom_call.1']
    #allocation5 [shape = 's32[1]{0}', space=sflag, size = 0x4, scoped, tag = 'scoped memory for tpu_custom_call.1']
    #allocation6 [shape = 'u8[4096]{0}', space=vmem, size = 0x1000, scoped, tag = 'input window, operand 1, single buffered']
    #allocation7 [shape = 's32[1]{0}', space=sflag, size = 0x4, scoped, tag = 'scoped memory for tpu_custom_call.1']
    #allocation8 [shape = 'u8[4096]{0}', space=vmem, size = 0x1000, scoped, tag = 'input window, operand 2, single buffered']
    #allocation9 [shape = 'u8[65536]{0}', space=vmem, size = 0x10000, scoped, tag = 'input window, operand 3, single buffered']
    #allocation10 [shape = 's32[1]{0}', space=sflag, size = 0x4, scoped, tag = 'scoped memory for tpu_custom_call.1']
    #allocation11 [shape = 'u8[65536]{0}', space=vmem, size = 0x10000, scoped, tag = 'input window, operand 5, single buffered']
    #allocation12 [shape = 'u8[4096]{0}', space=vmem, size = 0x1000, scoped, tag = 'output window, operand 0, single buffered']
    %15 = vsyncpa [#allocation4], 0
    %16 = vsyncpa [#allocation7], 0
    %17 = vsyncpa [#allocation10], 0
    %18 = vsyncpa [#allocation5], 0
    // Predicated region
    $region2: #{tpu_custom_call.1} parent=1 // pred_check
      _
    $region3: #{tpu_custom_call.1} parent=1 // pred_check_branch
      %20 = sbr.rel (0) target = $region5
    $region4: #{tpu_custom_call.1} parent=1 // pred_region
      %s22 = ssub.s32 1024, 1024
      %23 = vsyncadd [#allocation4], %s22
      %s24 = sshll.u32 [#allocation3], 4
      %s25 = int_to_ptr.vmem [resolvable:$true] %s24
      %30 = dma.hbm_to_vmem [thread:$0]  %s0, 1024, %s25, [#allocation4], 128, 128, 8
    $region5: #{tpu_custom_call.1} parent=1 // pred_fallthru
      _
    // Predicated region
    $region6: #{tpu_custom_call.1} parent=1 // pred_check
      _
    $region7: #{tpu_custom_call.1} parent=1 // pred_check_branch
      %32 = sbr.rel (0) target = $region9
    $region8: #{tpu_custom_call.1} parent=1 // pred_region
      %s34 = ssub.s32 128, 128
      %35 = vsyncadd [#allocation7], %s34
      %s37 = sshll.u32 [#allocation6], 4
      %s38 = int_to_ptr.vmem [resolvable:$true] %s37
      %40 = dma.hbm_to_vmem [thread:$0]  %s1, 128, %s38, [#allocation7]
    $region9: #{tpu_custom_call.1} parent=1 // pred_fallthru
      _
    // Predicated region
    $region10: #{tpu_custom_call.1} parent=1 // pred_check
      _
    $region11: #{tpu_custom_call.1} parent=1 // pred_check_branch
      %42 = sbr.rel (0) target = $region13
    $region12: #{tpu_custom_call.1} parent=1 // pred_region
      %s44 = ssub.s32 128, 128
      %45 = vsyncadd [#allocation7], %s44
      %s47 = sshll.u32 [#allocation8], 4
      %s48 = int_to_ptr.vmem [resolvable:$true] %s47
      %50 = dma.hbm_to_vmem [thread:$0]  %s2, 128, %s48, [#allocation7]
    $region13: #{tpu_custom_call.1} parent=1 // pred_fallthru
      _
    // Predicated region
    $region14: #{tpu_custom_call.1} parent=1 // pred_check
      _
    $region15: #{tpu_custom_call.1} parent=1 // pred_check_branch
      %52 = sbr.rel (0) target = $region17
    $region16: #{tpu_custom_call.1} parent=1 // pred_region
      %s54 = ssub.s32 2048, 2048
      %55 = vsyncadd [#allocation10], %s54
      %s56 = sshll.u32 [#allocation9], 4
      %s57 = int_to_ptr.vmem [resolvable:$true] %s56
      %62 = dma.hbm_to_vmem [thread:$0]  %s3, 2048, %s57, [#allocation10], 128, 128, 8
    $region17: #{tpu_custom_call.1} parent=1 // pred_fallthru
      _
    // Predicated region
    $region18: #{tpu_custom_call.1} parent=1 // pred_check
      _
    $region19: #{tpu_custom_call.1} parent=1 // pred_check_branch
      %64 = sbr.rel (0) target = $region21
    $region20: #{tpu_custom_call.1} parent=1 // pred_region
      _
    $region21: #{tpu_custom_call.1} parent=1 // pred_fallthru
      _
    // Predicated region
    $region22: #{tpu_custom_call.1} parent=1 // pred_check
      _
    $region23: #{tpu_custom_call.1} parent=1 // pred_check_branch
      %66 = sbr.rel (0) target = $region25
    $region24: #{tpu_custom_call.1} parent=1 // pred_region
      %s68 = ssub.s32 2048, 2048
      %69 = vsyncadd [#allocation10], %s68
      %s70 = sshll.u32 [#allocation11], 4
      %s71 = int_to_ptr.vmem [resolvable:$true] %s70
      %76 = dma.hbm_to_vmem [thread:$0]  %s5, 2048, %s71, [#allocation10], 128, 128, 8
    $region25: #{tpu_custom_call.1} parent=1 // pred_fallthru
      _
    // Predicated region
    $region26: #{tpu_custom_call.1} parent=1 // pred_check
      _
    $region27: #{tpu_custom_call.1} parent=1 // pred_check_branch
      %78 = sbr.rel (0) target = $region29
    $region28: #{tpu_custom_call.1} parent=1 // pred_region
      _
    $region29: #{tpu_custom_call.1} parent=1 // pred_fallthru
      _
    // Predicated region
    $region30: #{tpu_custom_call.1} parent=1 // pred_check
      _
    $region31: #{tpu_custom_call.1} parent=1 // pred_check_branch
      %80 = sbr.rel (0) target = $region33
    $region32: #{tpu_custom_call.1} parent=1 // pred_region
      _
    $region33: #{tpu_custom_call.1} parent=1 // pred_fallthru
      _
    // Predicated region
    $region34: #{tpu_custom_call.1} parent=1 // pred_check
      _
    $region35: #{tpu_custom_call.1} parent=1 // pred_check_branch
      %82 = sbr.rel (0) target = $region37
    $region36: #{tpu_custom_call.1} parent=1 // pred_region
      _
    $region37: #{tpu_custom_call.1} parent=1 // pred_fallthru
      _
    // Predicated region
    $region38: #{tpu_custom_call.1} parent=1 // pred_check
      _
    $region39: #{tpu_custom_call.1} parent=1 // pred_check_branch
      %84 = sbr.rel (0) target = $region41
    $region40: #{tpu_custom_call.1} parent=1 // pred_region
      %85 = dma.done [#allocation4], 1024
    $region41: #{tpu_custom_call.1} parent=1 // pred_fallthru
      _
    // Predicated region
    $region42: #{tpu_custom_call.1} parent=1 // pred_check
      _
    $region43: #{tpu_custom_call.1} parent=1 // pred_check_branch
      %87 = sbr.rel (0) target = $region45
    $region44: #{tpu_custom_call.1} parent=1 // pred_region
      %88 = dma.done [#allocation7], 128
    $region45: #{tpu_custom_call.1} parent=1 // pred_fallthru
      _
    // Predicated region
    $region46: #{tpu_custom_call.1} parent=1 // pred_check
      _
    $region47: #{tpu_custom_call.1} parent=1 // pred_check_branch
      %90 = sbr.rel (0) target = $region49
    $region48: #{tpu_custom_call.1} parent=1 // pred_region
      %91 = dma.done [#allocation7], 128
    $region49: #{tpu_custom_call.1} parent=1 // pred_fallthru
      _
    // Predicated region
    $region50: #{tpu_custom_call.1} parent=1 // pred_check
      _
    $region51: #{tpu_custom_call.1} parent=1 // pred_check_branch
      %93 = sbr.rel (0) target = $region53
    $region52: #{tpu_custom_call.1} parent=1 // pred_region
      %94 = dma.done [#allocation10], 2048
    $region53: #{tpu_custom_call.1} parent=1 // pred_fallthru
      _
    // Predicated region
    $region54: #{tpu_custom_call.1} parent=1 // pred_check
      _
    $region55: #{tpu_custom_call.1} parent=1 // pred_check_branch
      %96 = sbr.rel (0) target = $region57
    $region56: #{tpu_custom_call.1} parent=1 // pred_region
      %97 = dma.done [#allocation10], 2048
    $region57: #{tpu_custom_call.1} parent=1 // pred_fallthru
      _
    %v98 = vld [vmem:[#allocation3] sm:$0xff]
    %v99 = vld [vmem:[#allocation3 + $0x8] sm:$0xff]
    %v100 = vld [vmem:[#allocation3 + $0x10] sm:$0xff]
    %v101 = vld [vmem:[#allocation3 + $0x18] sm:$0xff]
    %v102 = vld [vmem:[#allocation3 + $0x20] sm:$0xff]
    %v103 = vld [vmem:[#allocation3 + $0x28] sm:$0xff]
    %v104 = vld [vmem:[#allocation3 + $0x30] sm:$0xff]
    %v105 = vld [vmem:[#allocation3 + $0x38] sm:$0xff]
    %v106 = vld [vmem:[#allocation6] sm:$0xff]
    %v107 = vld [vmem:[#allocation8] sm:$0xff]
    %v108 = vld [vmem:[#allocation9] sm:$0xff]
    %v109 = vld [vmem:[#allocation9 + $0x8] sm:$0xff]
    %v110 = vld [vmem:[#allocation9 + $0x10] sm:$0xff]
    %v111 = vld [vmem:[#allocation9 + $0x18] sm:$0xff]
    %v112 = vld [vmem:[#allocation9 + $0x20] sm:$0xff]
    %v113 = vld [vmem:[#allocation9 + $0x28] sm:$0xff]
    %v114 = vld [vmem:[#allocation9 + $0x30] sm:$0xff]
    %v115 = vld [vmem:[#allocation9 + $0x38] sm:$0xff]
    %v116 = vld [vmem:[#allocation9 + $0x40] sm:$0xff]
    %v117 = vld [vmem:[#allocation9 + $0x48] sm:$0xff]
    %v118 = vld [vmem:[#allocation9 + $0x50] sm:$0xff]
    %v119 = vld [vmem:[#allocation9 + $0x58] sm:$0xff]
    %v120 = vld [vmem:[#allocation9 + $0x60] sm:$0xff]
    %v121 = vld [vmem:[#allocation9 + $0x68] sm:$0xff]
    %v122 = vld [vmem:[#allocation9 + $0x70] sm:$0xff]
    %v123 = vld [vmem:[#allocation9 + $0x78] sm:$0xff]
    %v124 = vld [vmem:[%s4] sm:$0x1]
    %v126 = vlaneseq
    %v127 = vshrl.u32 %v126, 7
    %v128 = vsub.s32 0, %v127
    %v129 = vrot.slane %v124, %v128
    %131 = vmatprep.subr.mxu0 0.0
    %132 = vmatpush1.msra.mxu0 %v123
    %133 = vmatprep.subr.mxu0 0.0
    %134 = vmatpush1.msra.mxu0 %v122
    %135 = vmatprep.subr.mxu0 0.0
    %136 = vmatpush1.msra.mxu0 %v121
    %137 = vmatprep.subr.mxu0 0.0
    %138 = vmatpush1.msra.mxu0 %v120
    %139 = vmatprep.subr.mxu0 0.0
    %140 = vmatpush1.msra.mxu0 %v119
    %141 = vmatprep.subr.mxu0 0.0
    %142 = vmatpush1.msra.mxu0 %v118
    %143 = vmatprep.subr.mxu0 0.0
    %144 = vmatpush1.msra.mxu0 %v117
    %145 = vmatprep.subr.mxu0 0.0
    %146 = vmatpush1.msra.mxu0 %v116
    %147 = vmatprep.subr.mxu0 0.0
    %148 = vmatpush1.msra.mxu0 %v115
    %149 = vmatprep.subr.mxu0 0.0
    %150 = vmatpush1.msra.mxu0 %v114
    %151 = vmatprep.subr.mxu0 0.0
    %152 = vmatpush1.msra.mxu0 %v113
    %153 = vmatprep.subr.mxu0 0.0
    %154 = vmatpush1.msra.mxu0 %v112
    %155 = vmatprep.subr.mxu0 0.0
    %156 = vmatpush1.msra.mxu0 %v111
    %157 = vmatprep.subr.mxu0 0.0
    %158 = vmatpush1.msra.mxu0 %v110
    %159 = vmatprep.subr.mxu0 0.0
    %160 = vmatpush1.msra.mxu0 %v109
    %161 = vmatprep.subr.mxu0 0.0
    %162 = vmatpush1.msra.mxu0 %v108
    %163 = vmatprep.subr.mxu0 0.0
    %164 = vmatpush2.msra.mxu0 0.0
    %165 = vmatprep.subr.mxu0 0.0
    %166 = vmatpush2.msra.mxu0 0.0
    %167 = vmatprep.subr.mxu0 0.0
    %168 = vmatpush2.msra.mxu0 0.0
    %169 = vmatprep.subr.mxu0 0.0
    %170 = vmatpush2.msra.mxu0 0.0
    %171 = vmatprep.subr.mxu0 0.0
    %172 = vmatpush2.msra.mxu0 0.0
    %173 = vmatprep.subr.mxu0 0.0
    %174 = vmatpush2.msra.mxu0 0.0
    %175 = vmatprep.subr.mxu0 0.0
    %176 = vmatpush2.msra.mxu0 0.0
    %177 = vmatprep.subr.mxu0 0.0
    %178 = vmatpush2.msra.mxu0 0.0
    %179 = vmatprep.subr.mxu0 0.0
    %180 = vmatpush2.msra.mxu0 0.0
    %181 = vmatprep.subr.mxu0 0.0
    %182 = vmatpush2.msra.mxu0 0.0
    %183 = vmatprep.subr.mxu0 0.0
    %184 = vmatpush2.msra.mxu0 0.0
    %185 = vmatprep.subr.mxu0 0.0
    %186 = vmatpush2.msra.mxu0 0.0
    %187 = vmatprep.subr.mxu0 0.0
    %188 = vmatpush2.msra.mxu0 0.0
    %189 = vmatprep.subr.mxu0 0.0
    %190 = vmatpush2.msra.mxu0 0.0
    %191 = vmatprep.subr.mxu0 0.0
    %192 = vmatpush2.msra.mxu0 0.0
    %193 = vmatprep.subr.mxu0 0.0
    %194 = vmatpush2.msra.mxu0 0.0
    %195 = vmatprep.mubr.f32.mxu0 0.0
    %196 = vmatmul.mubr.f32.gmra.mxu0 %v98
    %v197 = vpop.f32.mrf.mxu0
    %v198 = vadd.f32 %v129, %v197
    %v199 = vpop.f32.mrf.mxu0
    %200 = vmatprep.mubr.f32.mxu0 0.0
    %201 = vmatmul.mubr.f32.gmra.mxu0 %v99
    %v202 = vpop.f32.mrf.mxu0
    %v203 = vadd.f32 %v129, %v202
    %v204 = vpop.f32.mrf.mxu0
    %205 = vmatprep.mubr.f32.mxu0 0.0
    %206 = vmatmul.mubr.f32.gmra.mxu0 %v100
    %v207 = vpop.f32.mrf.mxu0
    %v208 = vadd.f32 %v129, %v207
    %v209 = vpop.f32.mrf.mxu0
    %210 = vmatprep.mubr.f32.mxu0 0.0
    %211 = vmatmul.mubr.f32.gmra.mxu0 %v101
    %v212 = vpop.f32.mrf.mxu0
    %v213 = vadd.f32 %v129, %v212
    %v214 = vpop.f32.mrf.mxu0
    %215 = vmatprep.mubr.f32.mxu0 0.0
    %216 = vmatmul.mubr.f32.gmra.mxu0 %v102
    %v217 = vpop.f32.mrf.mxu0
    %v218 = vadd.f32 %v129, %v217
    %v219 = vpop.f32.mrf.mxu0
    %220 = vmatprep.mubr.f32.mxu0 0.0
    %221 = vmatmul.mubr.f32.gmra.mxu0 %v103
    %v222 = vpop.f32.mrf.mxu0
    %v223 = vadd.f32 %v129, %v222
    %v224 = vpop.f32.mrf.mxu0
    %225 = vmatprep.mubr.f32.mxu0 0.0
    %226 = vmatmul.mubr.f32.gmra.mxu0 %v104
    %v227 = vpop.f32.mrf.mxu0
    %v228 = vadd.f32 %v129, %v227
    %v229 = vpop.f32.mrf.mxu0
    %230 = vmatprep.mubr.f32.mxu0 0.0
    %231 = vmatmul.mubr.f32.gmra.mxu0 %v105
    %v232 = vpop.f32.mrf.mxu0
    %v233 = vadd.f32 %v129, %v232
    %v234 = vpop.f32.mrf.mxu0
    %235 = vdwg.mxu0
    %v236 = vld [vmem:[#allocation11] sm:$0xff]
    %v237 = vld [vmem:[#allocation11 + $0x8] sm:$0xff]
    %v238 = vld [vmem:[#allocation11 + $0x10] sm:$0xff]
    %v239 = vld [vmem:[#allocation11 + $0x18] sm:$0xff]
    %v240 = vld [vmem:[#allocation11 + $0x20] sm:$0xff]
    %v241 = vld [vmem:[#allocation11 + $0x28] sm:$0xff]
    %v242 = vld [vmem:[#allocation11 + $0x30] sm:$0xff]
    %v243 = vld [vmem:[#allocation11 + $0x38] sm:$0xff]
    %v244 = vld [vmem:[#allocation11 + $0x40] sm:$0xff]
    %v245 = vld [vmem:[#allocation11 + $0x48] sm:$0xff]
    %v246 = vld [vmem:[#allocation11 + $0x50] sm:$0xff]
    %v247 = vld [vmem:[#allocation11 + $0x58] sm:$0xff]
    %v248 = vld [vmem:[#allocation11 + $0x60] sm:$0xff]
    %v249 = vld [vmem:[#allocation11 + $0x68] sm:$0xff]
    %v250 = vld [vmem:[#allocation11 + $0x70] sm:$0xff]
    %v251 = vld [vmem:[#allocation11 + $0x78] sm:$0xff]
    %v252 = vld [vmem:[%s6] sm:$0x1]
    %v254 = vlaneseq
    %v255 = vshrl.u32 %v254, 7
    %v256 = vsub.s32 0, %v255
    %v257 = vrot.slane %v252, %v256
    %259 = vmatprep.subr.mxu0 0.0
    %260 = vmatpush1.msra.mxu0 %v251
    %261 = vmatprep.subr.mxu0 0.0
    %262 = vmatpush1.msra.mxu0 %v250
    %263 = vmatprep.subr.mxu0 0.0
    %264 = vmatpush1.msra.mxu0 %v249
    %265 = vmatprep.subr.mxu0 0.0
    %266 = vmatpush1.msra.mxu0 %v248
    %267 = vmatprep.subr.mxu0 0.0
    %268 = vmatpush1.msra.mxu0 %v247
    %269 = vmatprep.subr.mxu0 0.0
    %270 = vmatpush1.msra.mxu0 %v246
    %271 = vmatprep.subr.mxu0 0.0
    %272 = vmatpush1.msra.mxu0 %v245
    %273 = vmatprep.subr.mxu0 0.0
    %274 = vmatpush1.msra.mxu0 %v244
    %275 = vmatprep.subr.mxu0 0.0
    %276 = vmatpush1.msra.mxu0 %v243
    %277 = vmatprep.subr.mxu0 0.0
    %278 = vmatpush1.msra.mxu0 %v242
    %279 = vmatprep.subr.mxu0 0.0
    %280 = vmatpush1.msra.mxu0 %v241
    %281 = vmatprep.subr.mxu0 0.0
    %282 = vmatpush1.msra.mxu0 %v240
    %283 = vmatprep.subr.mxu0 0.0
    %284 = vmatpush1.msra.mxu0 %v239
    %285 = vmatprep.subr.mxu0 0.0
    %286 = vmatpush1.msra.mxu0 %v238
    %287 = vmatprep.subr.mxu0 0.0
    %288 = vmatpush1.msra.mxu0 %v237
    %289 = vmatprep.subr.mxu0 0.0
    %290 = vmatpush1.msra.mxu0 %v236
    %291 = vmatprep.subr.mxu0 0.0
    %292 = vmatpush2.msra.mxu0 0.0
    %293 = vmatprep.subr.mxu0 0.0
    %294 = vmatpush2.msra.mxu0 0.0
    %295 = vmatprep.subr.mxu0 0.0
    %296 = vmatpush2.msra.mxu0 0.0
    %297 = vmatprep.subr.mxu0 0.0
    %298 = vmatpush2.msra.mxu0 0.0
    %299 = vmatprep.subr.mxu0 0.0
    %300 = vmatpush2.msra.mxu0 0.0
    %301 = vmatprep.subr.mxu0 0.0
    %302 = vmatpush2.msra.mxu0 0.0
    %303 = vmatprep.subr.mxu0 0.0
    %304 = vmatpush2.msra.mxu0 0.0
    %305 = vmatprep.subr.mxu0 0.0
    %306 = vmatpush2.msra.mxu0 0.0
    %307 = vmatprep.subr.mxu0 0.0
    %308 = vmatpush2.msra.mxu0 0.0
    %309 = vmatprep.subr.mxu0 0.0
    %310 = vmatpush2.msra.mxu0 0.0
    %311 = vmatprep.subr.mxu0 0.0
    %312 = vmatpush2.msra.mxu0 0.0
    %313 = vmatprep.subr.mxu0 0.0
    %314 = vmatpush2.msra.mxu0 0.0
    %315 = vmatprep.subr.mxu0 0.0
    %316 = vmatpush2.msra.mxu0 0.0
    %317 = vmatprep.subr.mxu0 0.0
    %318 = vmatpush2.msra.mxu0 0.0
    %319 = vmatprep.subr.mxu0 0.0
    %320 = vmatpush2.msra.mxu0 0.0
    %321 = vmatprep.subr.mxu0 0.0
    %322 = vmatpush2.msra.mxu0 0.0
    %323 = vmatprep.mubr.f32.mxu0 0.0
    %324 = vmatmul.mubr.f32.gmra.mxu0 %v106
    %v325 = vpop.f32.mrf.mxu0
    %v326 = vadd.f32 %v257, %v325
    %v327 = vpop.f32.mrf.mxu0
    %328 = vdwg.mxu0
    %v330 = vcombine.high %v326, %v326
    %v332 = vunpack.c.l.s4 1966171168
    %v333 = vunpack.c.0.s8 %v332
    %v334 = vlaneseq
    %v335 = vshrl.u32 %v334, 7
    %v336 = vsub.s32 %v333, %v335
    %v337 = vrot.slane %v326, %v336
    %v339 = vunpack.c.l.s4 1966171168
    %v340 = vunpack.c.0.s8 %v339
    %v341 = vlaneseq
    %v342 = vshrl.u32 %v341, 7
    %v343 = vsub.s32 %v340, %v342
    %v344 = vrot.slane %v330, %v343
    %v345 = vcombine.high %v337, %v337
    %v346 = vcombine.high %v344, %v344
    %v348 = vunpack.c.l.s4 1966171168
    %v349 = vunpack.c.0.s8 %v348
    %v350 = vlaneseq
    %v351 = vshrl.u32 %v350, 7
    %v352 = vsub.s32 %v349, %v351
    %v353 = vrot.slane %v337, %v352
    %v355 = vunpack.c.l.s4 1966171168
    %v356 = vunpack.c.0.s8 %v355
    %v357 = vlaneseq
    %v358 = vshrl.u32 %v357, 7
    %v359 = vsub.s32 %v356, %v358
    %v360 = vrot.slane %v344, %v359
    %v362 = vunpack.c.l.s4 1966171168
    %v363 = vunpack.c.0.s8 %v362
    %v364 = vlaneseq
    %v365 = vshrl.u32 %v364, 7
    %v366 = vsub.s32 %v363, %v365
    %v367 = vrot.slane %v345, %v366
    %v369 = vunpack.c.l.s4 1966171168
    %v370 = vunpack.c.0.s8 %v369
    %v371 = vlaneseq
    %v372 = vshrl.u32 %v371, 7
    %v373 = vsub.s32 %v370, %v372
    %v374 = vrot.slane %v346, %v373
    %v375 = vcombine.high %v353, %v353
    %v376 = vcombine.high %v360, %v360
    %v377 = vcombine.high %v367, %v367
    %v378 = vcombine.high %v374, %v374
    %v379 = vlaneseq
    %v380 = vshrl.u32 %v379, 7
    %v381 = vsub.s32 0, %v380
    %v382 = vrot.slane %v353, %v381
    %v383 = vlaneseq
    %v384 = vshrl.u32 %v383, 7
    %v385 = vsub.s32 0, %v384
    %v386 = vrot.slane %v367, %v385
    %v387 = vlaneseq
    %v388 = vshrl.u32 %v387, 7
    %v389 = vsub.s32 0, %v388
    %v390 = vrot.slane %v375, %v389
    %v391 = vlaneseq
    %v392 = vshrl.u32 %v391, 7
    %v393 = vsub.s32 0, %v392
    %v394 = vrot.slane %v377, %v393
    %v395 = vlaneseq
    %v396 = vshrl.u32 %v395, 7
    %v397 = vsub.s32 0, %v396
    %v398 = vrot.slane %v360, %v397
    %v399 = vlaneseq
    %v400 = vshrl.u32 %v399, 7
    %v401 = vsub.s32 0, %v400
    %v402 = vrot.slane %v374, %v401
    %v403 = vlaneseq
    %v404 = vshrl.u32 %v403, 7
    %v405 = vsub.s32 0, %v404
    %v406 = vrot.slane %v376, %v405
    %v407 = vlaneseq
    %v408 = vshrl.u32 %v407, 7
    %v409 = vsub.s32 0, %v408
    %v410 = vrot.slane %v378, %v409
    %v419 = vadd.f32 %v198, %v382
    %v420 = vadd.f32 %v203, %v386
    %v421 = vadd.f32 %v208, %v390
    %v422 = vadd.f32 %v213, %v394
    %v423 = vadd.f32 %v218, %v398
    %v424 = vadd.f32 %v223, %v402
    %v425 = vadd.f32 %v228, %v406
    %v426 = vadd.f32 %v233, %v410
    %v427 = vtanh.pop %v419
    %v428 = vtanh.pop %v420
    %v429 = vtanh.pop %v421
    %v430 = vtanh.pop %v422
    %v431 = vtanh.pop %v423
    %v432 = vtanh.pop %v424
    %v433 = vtanh.pop %v425
    %v434 = vtanh.pop %v426
    %v435 = vld [vmem:[%s7] sm:$0x1]
    %v437 = vlaneseq
    %v438 = vshrl.u32 %v437, 7
    %v439 = vsub.s32 0, %v438
    %v440 = vrot.slane %v435, %v439
    %v442 = vmul.f32 %v427, %v440
    %v443 = vmul.f32 %v428, %v440
    %v444 = vmul.f32 %v429, %v440
    %v445 = vmul.f32 %v430, %v440
    %v446 = vmul.f32 %v431, %v440
    %v447 = vmul.f32 %v432, %v440
    %v448 = vmul.f32 %v433, %v440
    %v449 = vmul.f32 %v434, %v440
    %450 = vadd.xlane.f32.xlu0 %v442
    %v451 = vpop.xlane.xlu0 %450
    %452 = vadd.xlane.f32.xlu0 %v443
    %v453 = vpop.xlane.xlu0 %452
    %454 = vadd.xlane.f32.xlu0 %v444
    %v455 = vpop.xlane.xlu0 %454
    %456 = vadd.xlane.f32.xlu0 %v445
    %v457 = vpop.xlane.xlu0 %456
    %458 = vadd.xlane.f32.xlu0 %v446
    %v459 = vpop.xlane.xlu0 %458
    %460 = vadd.xlane.f32.xlu0 %v447
    %v461 = vpop.xlane.xlu0 %460
    %462 = vadd.xlane.f32.xlu0 %v448
    %v463 = vpop.xlane.xlu0 %462
    %464 = vadd.xlane.f32.xlu0 %v449
    %v465 = vpop.xlane.xlu0 %464
    %s466 = sld [smem:[#allocation2]]
    %v467 = vstv %s466
    %v468 = vadd.f32 %v451, %v467
    %v469 = vadd.f32 %v453, %v467
    %v470 = vadd.f32 %v455, %v467
    %v471 = vadd.f32 %v457, %v467
    %v472 = vadd.f32 %v459, %v467
    %v473 = vadd.f32 %v461, %v467
    %v474 = vadd.f32 %v463, %v467
    %v475 = vadd.f32 %v465, %v467
    %vm476 = vcmp.gt.s32.totalorder %v107, 0
    %v485 = vlaneseq
    %v486 = vand.u32 %v485, 127
    %v487 = vlaneseq
    %v488 = vshrl.u32 %v487, 7
    %v489 = vsub.s32 %v486, %v488
    %v490 = vrot.slane %v468, %v489
    %v491 = vlaneseq
    %v492 = vshrl.u32 %v491, 7
    %v493 = vsub.s32 %v486, %v492
    %v494 = vrot.slane %v469, %v493
    %v495 = vlaneseq
    %v496 = vshrl.u32 %v495, 7
    %v497 = vsub.s32 %v486, %v496
    %v498 = vrot.slane %v470, %v497
    %v499 = vlaneseq
    %v500 = vshrl.u32 %v499, 7
    %v501 = vsub.s32 %v486, %v500
    %v502 = vrot.slane %v471, %v501
    %v503 = vlaneseq
    %v504 = vshrl.u32 %v503, 7
    %v505 = vsub.s32 %v486, %v504
    %v506 = vrot.slane %v472, %v505
    %v507 = vlaneseq
    %v508 = vshrl.u32 %v507, 7
    %v509 = vsub.s32 %v486, %v508
    %v510 = vrot.slane %v473, %v509
    %v511 = vlaneseq
    %v512 = vshrl.u32 %v511, 7
    %v513 = vsub.s32 %v486, %v512
    %v514 = vrot.slane %v474, %v513
    %v515 = vlaneseq
    %v516 = vshrl.u32 %v515, 7
    %v517 = vsub.s32 %v486, %v516
    %v518 = vrot.slane %v475, %v517
    %vm519 = vcmask 1041409
    %v520 = vsel %vm519, %v494, %v490
    %vm521 = vcmask 1042434
    %v522 = vsel %vm521, %v498, %v520
    %vm523 = vcmask 1043459
    %v524 = vsel %vm523, %v502, %v522
    %vm525 = vcmask 1044484
    %v526 = vsel %vm525, %v506, %v524
    %vm527 = vcmask 1045509
    %v528 = vsel %vm527, %v510, %v526
    %vm529 = vcmask 1046534
    %v530 = vsel %vm529, %v514, %v528
    %vm531 = vcmask 1047559
    %v532 = vsel %vm531, %v518, %v530
    %v534 = vsel %vm476, -1e+09, %v532
    %vm535 = vcmask 64512
    %v536 = vsel %vm535, %v534, -inf
    %537 = vmax.xlane.f32.xlu0 %v536
    %v538 = vpop.xlane.xlu0 %537
    %v539 = vsub.f32 %v534, %v538
    %v540 = vmul.f32 %v539, 1.442695
    %v541 = vpow.pop %v540
    %v542 = vsel %vm535, %v541, 0.0
    %543 = vadd.xlane.f32.xlu0 %v542
    %v544 = vpop.xlane.xlu0 %543
    %v545 = vrcp.pop %v544
    %v546 = vmul.f32 %v541, %v545
    %v547 = vlaneseq
    %v548 = vshrl.u32 %v547, 7
    %v549 = vsub.s32 0, %v548
    %v550 = vrot.slane %v546, %v549
    %552 = vbcast.lane.b32.xlu0 %v550, 256
    %v553 = vpop.permute.xlu0 %552
    %v554 = vlaneseq
    %v555 = vshrl.u32 %v554, 7
    %v556 = vsub.s32 1, %v555
    %v557 = vrot.slane %v546, %v556
    %559 = vbcast.lane.b32.xlu0 %v557, 256
    %v560 = vpop.permute.xlu0 %559
    %v561 = vlaneseq
    %v562 = vshrl.u32 %v561, 7
    %v563 = vsub.s32 2, %v562
    %v564 = vrot.slane %v546, %v563
    %566 = vbcast.lane.b32.xlu0 %v564, 256
    %v567 = vpop.permute.xlu0 %566
    %v568 = vlaneseq
    %v569 = vshrl.u32 %v568, 7
    %v570 = vsub.s32 3, %v569
    %v571 = vrot.slane %v546, %v570
    %573 = vbcast.lane.b32.xlu0 %v571, 256
    %v574 = vpop.permute.xlu0 %573
    %v575 = vlaneseq
    %v576 = vshrl.u32 %v575, 7
    %v577 = vsub.s32 4, %v576
    %v578 = vrot.slane %v546, %v577
    %580 = vbcast.lane.b32.xlu0 %v578, 256
    %v581 = vpop.permute.xlu0 %580
    %v582 = vlaneseq
    %v583 = vshrl.u32 %v582, 7
    %v584 = vsub.s32 5, %v583
    %v585 = vrot.slane %v546, %v584
    %587 = vbcast.lane.b32.xlu0 %v585, 256
    %v588 = vpop.permute.xlu0 %587
    %v589 = vlaneseq
    %v590 = vshrl.u32 %v589, 7
    %v591 = vsub.s32 6, %v590
    %v592 = vrot.slane %v546, %v591
    %594 = vbcast.lane.b32.xlu0 %v592, 256
    %v595 = vpop.permute.xlu0 %594
    %v596 = vlaneseq
    %v597 = vshrl.u32 %v596, 7
    %v598 = vsub.s32 7, %v597
    %v599 = vrot.slane %v546, %v598
    %601 = vbcast.lane.b32.xlu0 %v599, 256
    %v602 = vpop.permute.xlu0 %601
    %v603 = vmul.f32 %v553, %v98
    %v604 = vmul.f32 %v560, %v99
    %v605 = vmul.f32 %v567, %v100
    %v606 = vmul.f32 %v574, %v101
    %v607 = vmul.f32 %v581, %v102
    %v608 = vmul.f32 %v588, %v103
    %v609 = vmul.f32 %v595, %v104
    %v610 = vmul.f32 %v602, %v105
    %v611 = vrot.slane %v603, 4
    %v612 = vadd.f32 %v603, %v611
    %v613 = vrot.slane %v612, 2
    %v614 = vadd.f32 %v612, %v613
    %v615 = vrot.slane %v614, 1
    %v616 = vadd.f32 %v614, %v615
    %v617 = vrot.slane %v604, 4
    %v618 = vadd.f32 %v604, %v617
    %v619 = vrot.slane %v618, 2
    %v620 = vadd.f32 %v618, %v619
    %v621 = vrot.slane %v620, 1
    %v622 = vadd.f32 %v620, %v621
    %v623 = vrot.slane %v605, 4
    %v624 = vadd.f32 %v605, %v623
    %v625 = vrot.slane %v624, 2
    %v626 = vadd.f32 %v624, %v625
    %v627 = vrot.slane %v626, 1
    %v628 = vadd.f32 %v626, %v627
    %v629 = vrot.slane %v606, 4
    %v630 = vadd.f32 %v606, %v629
    %v631 = vrot.slane %v630, 2
    %v632 = vadd.f32 %v630, %v631
    %v633 = vrot.slane %v632, 1
    %v634 = vadd.f32 %v632, %v633
    %v635 = vrot.slane %v607, 4
    %v636 = vadd.f32 %v607, %v635
    %v637 = vrot.slane %v636, 2
    %v638 = vadd.f32 %v636, %v637
    %v639 = vrot.slane %v638, 1
    %v640 = vadd.f32 %v638, %v639
    %v641 = vrot.slane %v608, 4
    %v642 = vadd.f32 %v608, %v641
    %v643 = vrot.slane %v642, 2
    %v644 = vadd.f32 %v642, %v643
    %v645 = vrot.slane %v644, 1
    %v646 = vadd.f32 %v644, %v645
    %v647 = vrot.slane %v609, 4
    %v648 = vadd.f32 %v609, %v647
    %v649 = vrot.slane %v648, 2
    %v650 = vadd.f32 %v648, %v649
    %v651 = vrot.slane %v650, 1
    %v652 = vadd.f32 %v650, %v651
    %v653 = vrot.slane %v610, 4
    %v654 = vadd.f32 %v610, %v653
    %v655 = vrot.slane %v654, 2
    %v656 = vadd.f32 %v654, %v655
    %v657 = vrot.slane %v656, 1
    %v658 = vadd.f32 %v656, %v657
    %v667 = vsel %vm519, %v622, %v616
    %v668 = vsel %vm521, %v628, %v667
    %v669 = vsel %vm523, %v634, %v668
    %v670 = vsel %vm525, %v640, %v669
    %v671 = vsel %vm527, %v646, %v670
    %v672 = vsel %vm529, %v652, %v671
    %v673 = vsel %vm531, %v658, %v672
    %v675 = vpack.c.bf16 %v673, %v673
    %v676 = vpack.c.bf16 %v106, %v106
    %v679 = vunpack.c.l.b16 %v675
    %v680 = vunpack.c.l.b16 %v676
    %v681 = vpack.c.b16 %v680, %v679
    %683 = vst [vmem:[#allocation12] sm:$0xff] %v681
    // Predicated region
    $region58: #{tpu_custom_call.1} parent=1 // pred_check
      _
    $region59: #{tpu_custom_call.1} parent=1 // pred_check_branch
      %685 = sbr.rel (0) target = $region61
    $region60: #{tpu_custom_call.1} parent=1 // pred_region
      %s687 = ssub.s32 128, 128
      %688 = vsyncadd [#allocation5], %s687
      %s690 = sshll.u32 [#allocation12], 4
      %s691 = int_to_ptr.vmem [resolvable:$true] %s690
      %693 = dma.vmem_to_hbm [thread:$0]  %s691, 128, %s9, [#allocation5]
    $region61: #{tpu_custom_call.1} parent=1 // pred_fallthru
      _
    // Predicated region
    $region62: #{tpu_custom_call.1} parent=1 // pred_check
      _
    $region63: #{tpu_custom_call.1} parent=1 // pred_check_branch
      %695 = sbr.rel (0) target = $region65
    $region64: #{tpu_custom_call.1} parent=1 // pred_region
      %696 = dma.done [#allocation5], 128
    $region65: #{tpu_custom_call.1} parent=1 // pred_fallthru
      _
    %697 = vsyncpa [#allocation4], 1
    %698 = vsyncpa [#allocation7], 1
    %699 = vsyncpa [#allocation10], 1
    %700 = vsyncpa [#allocation5], 1

</llo_original>
